<compile_context>
chip_gen: v5e
topology: v5e:2x2
jax: 0.10.0
libtpu: 0.0.40
codegen_flags: <defaults>
</compile_context>

<pallas_src>
import functools

import jax
import jax.numpy as jnp
from jax.experimental import pallas as pl
from jax.experimental.pallas import tpu as pltpu


def _attention_kernel(compute_dtype, bias_ref, enc_ref, wenc_ref, v_ref,
                      ctx_ref, aw_ref):
    # bias_ref: (Bt, H)      hoisted (ht @ W_ht^T + b) per batch, lane-dense
    # enc_ref:  (Bt, S, 2H)  encoder outputs for this batch block
    # wenc_ref: (2H, H)      attn weight slice acting on enc (feature-major)
    # v_ref:    (1, H)       v weight row (no bias)
    # ctx_ref:  (Bt, 2H)     context output (lane-dense)
    # aw_ref:   (Bt, S)      attention weights output (lane-dense)
    bt, s, two_h = enc_ref.shape
    h = wenc_ref.shape[1]

    enc = enc_ref[...]                                            # (Bt, S, 2H)
    enc_c = enc.astype(compute_dtype)
    w_enc = wenc_ref[...].astype(compute_dtype)                   # (2H, H)

    # One big MXU matmul over all Bt*S rows of the block.
    e = jnp.dot(enc_c.reshape(bt * s, two_h), w_enc,
                preferred_element_type=jnp.float32)               # (Bt*S, H)
    # energy = ReLU(enc @ W_enc + (ht @ W_ht + b))  -- concat folded, ht hoisted.
    e = e.reshape(bt, s, h) + bias_ref[...][:, None, :].astype(jnp.float32)
    e = jnp.maximum(e, 0.0)                                       # (Bt, S, H)

    # scores[b, s] = e[b, s, :] . v   -- lane contraction on VPU/XLU (an N=1
    # MXU matmul would waste the array); result has S on the lane axis.
    scores = jnp.sum(e * v_ref[...].astype(jnp.float32)[None, :, :],
                     axis=-1)                                     # (Bt, S)

    # Numerically-stable softmax with the normalization folded out: the
    # context reduction below uses the unnormalized p, and a single per-row
    # reciprocal scales both outputs at the end.
    m = jnp.max(scores, axis=-1, keepdims=True)                   # (Bt, 1)
    p = jnp.exp(scores - m)                                       # (Bt, S)
    inv = pl.reciprocal(jnp.sum(p, axis=-1, keepdims=True),
                        approx=False)                             # (Bt, 1)

    # context[b, :] = sum_s w[b, s] * enc[b, s, :]
    # VPU broadcast-multiply + sublane reduction over S -- replaces Bt
    # serialized M=1 MXU matmuls and overlaps with the next tile's projection.
    ctx = jnp.sum(p[:, :, None] * enc.astype(jnp.float32), axis=1)  # (Bt, 2H)

    ctx_ref[...] = (ctx * inv).astype(ctx_ref.dtype)              # lane-dense
    aw_ref[...] = (p * inv).astype(aw_ref.dtype)                  # lane-dense


def _vmem_bytes(bb, s, h, enc_itemsize, out_itemsize, compute_itemsize):
    """Approximate total scoped-VMEM footprint for one batch block."""
    two_h = 2 * h
    # Double-buffered pipelined operands / results.
    enc_in = 2 * bb * s * two_h * enc_itemsize
    bias_in = 2 * bb * h * 4
    w_in = 2 * (two_h * h + h) * 4
    ctx_out = 2 * bb * two_h * out_itemsize
    aw_out = 2 * bb * s * out_itemsize
    # In-kernel live intermediates (roughly): compute-dtype enc copy, f32
    # energy, f32 weighted-enc product before the S reduction, score rows.
    enc_cast = bb * s * two_h * compute_itemsize if compute_itemsize != enc_itemsize else 0
    energy = bb * s * h * 4
    prod = bb * s * two_h * 4
    scores = 4 * bb * s * 4
    return (enc_in + bias_in + w_in + ctx_out + aw_out
            + enc_cast + energy + prod + scores)


def _default_budget_bytes():
    """Generation-aware per-block VMEM budget (conservative fallback)."""
    try:
        vmem = pltpu.get_tpu_info().vmem_capacity_bytes
        if vmem >= (96 << 20):
            return 20 << 20    # v5e / v6e: 128 MiB physical VMEM
        return 12 << 20        # v7x: 64 MiB per TensorCore
    except Exception:
        return 12 << 20


def _pick_block_b(batch, seq, h, enc_itemsize, out_itemsize, compute_itemsize,
                  budget_bytes):
    """Largest valid divisor of `batch` whose full footprint fits the budget.

    Valid block sizes are either the full batch or a multiple of 8 so the
    sublane dimension of the 2-D bias / output blocks tiles cleanly.
    """
    candidates = [bb for bb in range(1, batch + 1)
                  if batch % bb == 0 and (bb == batch or bb % 8 == 0)]
    fitting = [bb for bb in candidates
               if _vmem_bytes(bb, seq, h, enc_itemsize, out_itemsize,
                              compute_itemsize) <= budget_bytes]
    if fitting:
        return max(fitting)
    return min(candidates)


def attention_network(ht, encoder_out, attn_w, attn_b, v_w,
                      *, block_b=None, compute_dtype=jnp.float32,
                      vmem_budget_bytes=None):
    """ht: (1, B, H), encoder_out: (B, S, 2H).

    attn_w: (H, 3H) (PyTorch Linear weight, out x in), attn_b: (H,), v_w: (1, H).
    Returns (context (B, 1, 2H), attention_weights (B, 1, S)).
    Set compute_dtype=jnp.bfloat16 for bf16 MXU operands (f32 accumulation);
    that will not meet 1e-5 tolerance against an f32 reference.
    """
    B, S, two_h = encoder_out.shape
    H = ht.shape[-1]
    assert two_h == 2 * H
    assert attn_w.shape == (H, 3 * H) and attn_b.shape == (H,) and v_w.shape == (1, H)

    # Parameter prep (in a real model do this once, outside the hot path):
    # split the 3H input dim and transpose to feature-major.
    w_ht = attn_w[:, :H].T                        # (H, H)
    w_enc = attn_w[:, H:].T                       # (2H, H)

    # Hoist the M=1 ht projection out of the kernel: fold into a per-batch
    # bias row, lane-dense (B, H).
    bias_b = ht[0] @ w_ht + attn_b                # (B, H)

    enc_isz = jnp.dtype(encoder_out.dtype).itemsize
    out_isz = enc_isz
    cmp_isz = jnp.dtype(compute_dtype).itemsize
    if vmem_budget_bytes is None:
        vmem_budget_bytes = _default_budget_bytes()
    if block_b is None:
        block_b = _pick_block_b(B, S, H, enc_isz, out_isz, cmp_isz,
                                vmem_budget_bytes)
    assert B % block_b == 0
    grid = (B // block_b,)

    est = _vmem_bytes(block_b, S, H, enc_isz, out_isz, cmp_isz)
    # Explicit scoped-VMEM limit: headroom over the estimate, never above the
    # 32 MiB that is safe on every generation (v7x has 64 MiB per TC).
    vmem_limit = int(min(max(est * 13 // 10, 16 << 20), 32 << 20))

    kernel = functools.partial(_attention_kernel, compute_dtype)

    # TODO(synk): on v7x, shard the batch grid axis across the 2 TensorCores
    # (pltpu.CORE_PARALLEL / pl.core_map) and re-derive block_b per-TC; kept
    # "parallel" here for portability across v5e/v6e/v7x.
    ctx2d, aw2d = pl.pallas_call(
        kernel,
        out_shape=(
            jax.ShapeDtypeStruct((B, 2 * H), encoder_out.dtype),
            jax.ShapeDtypeStruct((B, S), encoder_out.dtype),
        ),
        grid_spec=pltpu.PrefetchScalarGridSpec(
            num_scalar_prefetch=0,
            grid=grid,
            in_specs=[
                pl.BlockSpec((block_b, H), lambda i: (i, 0)),            # hoisted bias
                pl.BlockSpec((block_b, S, 2 * H), lambda i: (i, 0, 0)),  # encoder block
                pl.BlockSpec((2 * H, H), lambda i: (0, 0)),              # W_enc (const)
                pl.BlockSpec((1, H), lambda i: (0, 0)),                  # v row (const)
            ],
            out_specs=[
                pl.BlockSpec((block_b, 2 * H), lambda i: (i, 0)),        # context
                pl.BlockSpec((block_b, S), lambda i: (i, 0)),            # attn weights
            ],
        ),
        compiler_params=pltpu.CompilerParams(
            dimension_semantics=("parallel",),
            vmem_limit_bytes=vmem_limit),
    )(bias_b, encoder_out, w_enc, v_w)

    # Free layout ops in the wrapper: restore the PyTorch output shapes.
    return ctx2d[:, None, :], aw2d[:, None, :]


def _reference(ht, encoder_out, attn_w, attn_b, v_w):
    """Pure-JAX reference mirroring the PyTorch forward."""
    B, S, _ = encoder_out.shape
    ht_rep = jnp.broadcast_to(jnp.transpose(ht, (1, 0, 2)), (B, S, ht.shape[-1]))
    energy = jnp.concatenate([ht_rep, encoder_out], axis=2)
    energy = jnp.maximum(energy @ attn_w.T + attn_b, 0.0)
    attention = (energy @ v_w.T)[..., 0]                       # (B, S)
    w = jax.nn.softmax(attention, axis=1)[:, None, :]          # (B, 1, S)
    context = jnp.einsum("bos,bsh->boh", w, encoder_out)       # (B, 1, 2H)
    return context, w


if __name__ == "__main__":
    B, S, H = 2, 8, 32
    key = jax.random.PRNGKey(0)
    k1, k2, k3, k4, k5 = jax.random.split(key, 5)

    # Deterministic synthetic parameters (shapes from nn.Linear in __init__).
    attn_w = jax.random.normal(k1, (H, 3 * H), jnp.float32) * 0.1
    attn_b = jax.random.normal(k2, (H,), jnp.float32) * 0.1
    v_w = jax.random.normal(k3, (1, H), jnp.float32) * 0.1

    # Inputs: ht (1, B, H), encoder_out (B, S, 2H)
    ht = jax.random.normal(k4, (1, B, H), jnp.float32)
    encoder_out = jax.random.normal(k5, (B, S, 2 * H), jnp.float32)

    ctx, aw = attention_network(ht, encoder_out, attn_w, attn_b, v_w)
    jax.block_until_ready((ctx, aw))

    ctx_ref, aw_ref = _reference(ht, encoder_out, attn_w, attn_b, v_w)
    assert ctx.shape == (B, 1, 2 * H) and aw.shape == (B, 1, S)
    assert jnp.allclose(ctx, ctx_ref, atol=1e-5, rtol=1e-5)
    assert jnp.allclose(aw, aw_ref, atol=1e-5, rtol=1e-5)

    print("KERNEL_OK")
</pallas_src>

<mosaic_0001>
module attributes {stable_mosaic.version = 11 : i64} {
  func.func @_attention_kernel(%arg0: i32, %arg1: memref<2x32xf32, #tpu.memory_space<vmem>>, %arg2: memref<2x8x64xf32, #tpu.memory_space<vmem>>, %arg3: memref<64x32xf32, #tpu.memory_space<vmem>>, %arg4: memref<1x32xf32, #tpu.memory_space<vmem>>, %arg5: memref<2x64xf32, #tpu.memory_space<vmem>>, %arg6: memref<2x8xf32, #tpu.memory_space<vmem>>) attributes {dimension_semantics = [#tpu.dimension_semantics<parallel>], iteration_bounds = array<i64: 1>, scalar_prefetch = 0 : i64, scratch_operands = 0 : i64, tpu.core_type = #tpu.core_type<tc>, window_params = [{transform_indices = @transform_0, window_bounds = array<i64: 2, 32>}, {transform_indices = @transform_1, window_bounds = array<i64: 2, 8, 64>}, {pipeline_mode = #tpu.pipeline_mode<synchronous>, transform_indices = @transform_2, window_bounds = array<i64: 64, 32>}, {pipeline_mode = #tpu.pipeline_mode<synchronous>, transform_indices = @transform_3, window_bounds = array<i64: 1, 32>}, {transform_indices = @transform_4, window_bounds = array<i64: 2, 64>}, {transform_indices = @transform_5, window_bounds = array<i64: 2, 8>}]} {
    %c0 = arith.constant 0 : index
    %c0_0 = arith.constant 0 : index
    %c0_1 = arith.constant 0 : index
    %0 = vector.load %arg2[%c0, %c0_0, %c0_1] : memref<2x8x64xf32, #tpu.memory_space<vmem>>, vector<2x8x64xf32>
    %c0_2 = arith.constant 0 : index
    %c0_3 = arith.constant 0 : index
    %1 = vector.load %arg3[%c0_2, %c0_3] : memref<64x32xf32, #tpu.memory_space<vmem>>, vector<64x32xf32>
    %2 = vector.shape_cast %0 : vector<2x8x64xf32> to vector<16x64xf32>
    %cst = arith.constant dense<0.000000e+00> : vector<16x32xf32>
    %3 = tpu.matmul %2, %1, %cst {dimension_numbers = #tpu.dot_dimension_numbers<[1], [0], [0], [1], [0, 0, 1, 1], [], []>} : vector<16x64xf32>, vector<64x32xf32>, vector<16x32xf32> -> vector<16x32xf32>
    %4 = vector.shape_cast %3 : vector<16x32xf32> to vector<2x8x32xf32>
    %c0_4 = arith.constant 0 : index
    %c0_5 = arith.constant 0 : index
    %5 = vector.load %arg1[%c0_4, %c0_5] : memref<2x32xf32, #tpu.memory_space<vmem>>, vector<2x32xf32>
    %6 = vector.shape_cast %5 : vector<2x32xf32> to vector<2x1x32xf32>
    %7 = vector.broadcast %6 : vector<2x1x32xf32> to vector<2x8x32xf32>
    %8 = arith.addf %4, %7 : vector<2x8x32xf32>
    %cst_6 = arith.constant 0.000000e+00 : f32
    %9 = vector.broadcast %cst_6 : f32 to vector<2x8x32xf32>
    %10 = arith.maximumf %8, %9 : vector<2x8x32xf32>
    %c0_7 = arith.constant 0 : index
    %c0_8 = arith.constant 0 : index
    %11 = vector.load %arg4[%c0_7, %c0_8] : memref<1x32xf32, #tpu.memory_space<vmem>>, vector<1x32xf32>
    %12 = vector.shape_cast %11 : vector<1x32xf32> to vector<1x1x32xf32>
    %13 = vector.broadcast %12 : vector<1x1x32xf32> to vector<2x8x32xf32>
    %14 = arith.mulf %10, %13 : vector<2x8x32xf32>
    %cst_9 = arith.constant dense<0.000000e+00> : vector<2x8xf32>
    %15 = vector.multi_reduction <add>, %14, %cst_9 [2] : vector<2x8x32xf32> to vector<2x8xf32>
    %cst_10 = arith.constant dense<0xFF800000> : vector<2xf32>
    %16 = vector.multi_reduction <maximumf>, %15, %cst_10 [1] : vector<2x8xf32> to vector<2xf32>
    %17 = vector.shape_cast %16 : vector<2xf32> to vector<2x1xf32>
    %18 = vector.broadcast %17 : vector<2x1xf32> to vector<2x8xf32>
    %19 = arith.subf %15, %18 : vector<2x8xf32>
    %20 = math.exp %19 : vector<2x8xf32>
    %cst_11 = arith.constant dense<0.000000e+00> : vector<2xf32>
    %21 = vector.multi_reduction <add>, %20, %cst_11 [1] : vector<2x8xf32> to vector<2xf32>
    %22 = vector.shape_cast %21 : vector<2xf32> to vector<2x1xf32>
    %23 = tpu.reciprocal %22 : vector<2x1xf32> -> vector<2x1xf32>
    %24 = vector.shape_cast %20 : vector<2x8xf32> to vector<2x8x1xf32>
    %25 = vector.broadcast %24 : vector<2x8x1xf32> to vector<2x8x64xf32>
    %26 = arith.mulf %25, %0 : vector<2x8x64xf32>
    %cst_12 = arith.constant dense<0.000000e+00> : vector<2x64xf32>
    %27 = vector.multi_reduction <add>, %26, %cst_12 [1] : vector<2x8x64xf32> to vector<2x64xf32>
    %28 = vector.broadcast %23 : vector<2x1xf32> to vector<2x64xf32>
    %29 = arith.mulf %27, %28 : vector<2x64xf32>
    %c0_13 = arith.constant 0 : index
    %c0_14 = arith.constant 0 : index
    %30 = vector.load %arg5[%c0_13, %c0_14] : memref<2x64xf32, #tpu.memory_space<vmem>>, vector<2x64xf32>
    tpu.vector_store %arg5[%c0_13, %c0_14], %29 {strides = array<i32>} : memref<2x64xf32, #tpu.memory_space<vmem>>, vector<2x64xf32>,
    %31 = vector.broadcast %23 : vector<2x1xf32> to vector<2x8xf32>
    %32 = arith.mulf %20, %31 : vector<2x8xf32>
    %c0_15 = arith.constant 0 : index
    %c0_16 = arith.constant 0 : index
    %33 = vector.load %arg6[%c0_15, %c0_16] : memref<2x8xf32, #tpu.memory_space<vmem>>, vector<2x8xf32>
    tpu.vector_store %arg6[%c0_15, %c0_16], %32 {strides = array<i32>} : memref<2x8xf32, #tpu.memory_space<vmem>>, vector<2x8xf32>,
    return
  }
  func.func @transform_0(%arg0: i32) -> (i32, i32) {
    %c0_i32 = arith.constant 0 : i32
    %c0_i32_0 = arith.constant 0 : i32
    return %arg0, %c0_i32 : i32, i32
  }
  func.func @transform_1(%arg0: i32) -> (i32, i32, i32) {
    %c0_i32 = arith.constant 0 : i32
    %c0_i32_0 = arith.constant 0 : i32
    %c0_i32_1 = arith.constant 0 : i32
    return %arg0, %c0_i32, %c0_i32_0 : i32, i32, i32
  }
  func.func @transform_2(%arg0: i32) -> (i32, i32) {
    %c0_i32 = arith.constant 0 : i32
    %c0_i32_0 = arith.constant 0 : i32
    %c0_i32_1 = arith.constant 0 : i32
    return %c0_i32, %c0_i32_0 : i32, i32
  }
  func.func @transform_3(%arg0: i32) -> (i32, i32) {
    %c0_i32 = arith.constant 0 : i32
    %c0_i32_0 = arith.constant 0 : i32
    %c0_i32_1 = arith.constant 0 : i32
    return %c0_i32, %c0_i32_0 : i32, i32
  }
  func.func @transform_4(%arg0: i32) -> (i32, i32) {
    %c0_i32 = arith.constant 0 : i32
    %c0_i32_0 = arith.constant 0 : i32
    return %arg0, %c0_i32 : i32, i32
  }
  func.func @transform_5(%arg0: i32) -> (i32, i32) {
    %c0_i32 = arith.constant 0 : i32
    %c0_i32_0 = arith.constant 0 : i32
    return %arg0, %c0_i32 : i32, i32
  }
}

</mosaic_0001>

<llo_original>
// kernel: tpu_custom_call.1
$region0: #{tpu_custom_call.1}
  #allocation0 [shape = 'u32[]', space=smem, size = 0x4, offset = 0x4, fixed_abs, tag = 'smem constant byte address 0x4 - core index']
  #allocation1 [shape = 'u32[72,128]{1,0:T(1,128)}', space=vmem, size = 0x9000, scoped, tag = 'internal scratch']
  %s0 = inlined_call_operand.vmem [shape: f32[2,32], index: 0, kind: input, shape index: {}]
  %s1 = inlined_call_operand.vmem [shape: f32[2,8,64], index: 1, kind: input, shape index: {}]
  %s2 = inlined_call_operand.vmem [shape: f32[64,32], index: 2, kind: input, shape index: {}]
  %s3 = inlined_call_operand.vmem [shape: f32[1,32], index: 3, kind: input, shape index: {}]
  %s4 = inlined_call_operand.hbm [shape: f32[2,64], index: 4, kind: output, shape index: {0}]
  %s5 = inlined_call_operand.hbm [shape: f32[2,8], index: 5, kind: output, shape index: {1}]
  %6 = xla_tuple %s4, %s5
  %s7 = sld [smem:[#allocation0]]
  $region34: #{tpu_custom_call.1} parent=0
    _
  %s9 = ssub.s32 1, %s7
  %s10 = scalar_select 0, %s9, %s7
  $region1: #{tpu_custom_call.1} parent=0
    #allocation2 [shape = 'u8[1024]{0}', space=vmem, size = 0x400, scoped, tag = 'output window, operand 0, single buffered']
    #allocation3 [shape = 's32[1]{0}', space=sflag, size = 0x4, scoped, tag = 'scoped memory for tpu_custom_call.1']
    #allocation4 [shape = 'u8[1024]{0}', space=vmem, size = 0x400, scoped, tag = 'output window, operand 1, single buffered']
    #allocation5 [shape = 's32[1]{0}', space=sflag, size = 0x4, scoped, tag = 'scoped memory for tpu_custom_call.1']
    %11 = vsyncpa [#allocation3], 0
    %12 = vsyncpa [#allocation5], 0
    // Predicated region
    $region2: #{tpu_custom_call.1} parent=1 // pred_check
      _
    $region3: #{tpu_custom_call.1} parent=1 // pred_check_branch
      %14 = sbr.rel (0) target = $region5
    $region4: #{tpu_custom_call.1} parent=1 // pred_region
      _
    $region5: #{tpu_custom_call.1} parent=1 // pred_fallthru
      _
    // Predicated region
    $region6: #{tpu_custom_call.1} parent=1 // pred_check
      _
    $region7: #{tpu_custom_call.1} parent=1 // pred_check_branch
      %16 = sbr.rel (0) target = $region9
    $region8: #{tpu_custom_call.1} parent=1 // pred_region
      _
    $region9: #{tpu_custom_call.1} parent=1 // pred_fallthru
      _
    // Predicated region
    $region10: #{tpu_custom_call.1} parent=1 // pred_check
      _
    $region11: #{tpu_custom_call.1} parent=1 // pred_check_branch
      %18 = sbr.rel (0) target = $region13
    $region12: #{tpu_custom_call.1} parent=1 // pred_region
      _
    $region13: #{tpu_custom_call.1} parent=1 // pred_fallthru
      _
    // Predicated region
    $region14: #{tpu_custom_call.1} parent=1 // pred_check
      _
    $region15: #{tpu_custom_call.1} parent=1 // pred_check_branch
      %20 = sbr.rel (0) target = $region17
    $region16: #{tpu_custom_call.1} parent=1 // pred_region
      _
    $region17: #{tpu_custom_call.1} parent=1 // pred_fallthru
      _
    %v21 = vld [vmem:[%s1] sm:$0xff]
    %v22 = vld [vmem:[%s1 + $0x8] sm:$0xff]
    %v23 = vld [vmem:[%s2] sm:$0xff]
    %v24 = vld [vmem:[%s2 + $0x8] sm:$0xff]
    %v25 = vld [vmem:[%s2 + $0x10] sm:$0xff]
    %v26 = vld [vmem:[%s2 + $0x18] sm:$0xff]
    %v27 = vld [vmem:[%s2 + $0x20] sm:$0xff]
    %v28 = vld [vmem:[%s2 + $0x28] sm:$0xff]
    %v29 = vld [vmem:[%s2 + $0x30] sm:$0xff]
    %v30 = vld [vmem:[%s2 + $0x38] sm:$0xff]
    %vm31 = vcmask 523264
    %v33 = vsel %vm31, %v21, 0
    %v36 = vsel %vm31, %v22, 0
    %38 = vmatpush.msra.mxu0 0.0
    %39 = vmatpush.msra.mxu0 0.0
    %40 = vmatpush.msra.mxu0 0.0
    %41 = vmatpush.msra.mxu0 0.0
    %42 = vmatpush.msra.mxu0 0.0
    %43 = vmatpush.msra.mxu0 0.0
    %44 = vmatpush.msra.mxu0 0.0
    %45 = vmatpush.msra.mxu0 0.0
    %46 = vmatpush.msra.mxu0 %v30
    %47 = vmatpush.msra.mxu0 %v29
    %48 = vmatpush.msra.mxu0 %v28
    %49 = vmatpush.msra.mxu0 %v27
    %50 = vmatpush.msra.mxu0 %v26
    %51 = vmatpush.msra.mxu0 %v25
    %52 = vmatpush.msra.mxu0 %v24
    %53 = vmatpush.msra.mxu0 %v23
    %54 = vmatmul.f32.gmra.mxu0 %v33
    %v55 = vpop.f32.mrf.mxu0
    %v56 = vadd.f32 0.0, %v55
    %57 = vmatmul.f32.gmra.mxu0 %v36
    %v58 = vpop.f32.mrf.mxu0
    %v59 = vadd.f32 0.0, %v58
    %60 = vdwg.mxu0
    %v61 = vld [vmem:[%s0] sm:$0x3]
    %v63 = vrot.slane %v61, 1
    %v64 = vperm.slane %v61, 0
    %v65 = vperm.slane %v63, 0
    %v68 = vadd.f32 %v56, %v64
    %v69 = vadd.f32 %v59, %v65
    %v70 = vmax.f32 %v68, 0.0
    %v71 = vmax.f32 %v69, 0.0
    %v72 = vld [vmem:[%s3] sm:$0x1]
    %v74 = vperm.slane %v72, 0
    %v76 = vmul.f32 %v70, %v74
    %v77 = vmul.f32 %v71, %v74
    %vm78 = vcmask 261120
    %v79 = vsel %vm78, %v76, 0.0
    %80 = vadd.xlane.f32.xlu0 %v79
    %v81 = vpop.xlane.xlu0 %80
    %v82 = vsel %vm78, %v77, 0.0
    %83 = vadd.xlane.f32.xlu0 %v82
    %v84 = vpop.xlane.xlu0 %83
    %v87 = vlaneseq
    %v88 = vand.u32 %v87, 127
    %v89 = vperm.slane %v81, %v88
    %v90 = vperm.slane %v84, %v88
    %vm91 = vcmask 1041409
    %v92 = vsel %vm91, %v90, %v89
    %vm94 = vcmask 58368
    %v95 = vsel %vm94, %v92, -inf
    %96 = vmax.xlane.f32.xlu0 %v95
    %v97 = vpop.xlane.xlu0 %96
    %v99 = vperm.slane %v97, 0
    %v100 = vperm.slane %v97, 1
    %v103 = vsub.f32 %v81, %v99
    %v104 = vsub.f32 %v84, %v100
    %v105 = vmul.f32 %v103, 1.442695
    %v106 = vpow.pop %v105
    %v107 = vmul.f32 %v104, 1.442695
    %v108 = vpow.pop %v107
    %111 = vset.pattern.permute.xlu0 0
    %112 = vperm.xlu0 %111, %v106
    %v113 = vpop.permute.xlu0 %112
    %114 = vset.pattern.permute.xlu0 0
    %115 = vperm.xlu0 %114, %v108
    %v116 = vpop.permute.xlu0 %115
    %v117 = vperm.slane %v113, %v88
    %v118 = vperm.slane %v116, %v88
    %v119 = vsel %vm91, %v118, %v117
    %v121 = vsel %vm94, %v119, 0.0
    %122 = vadd.xlane.f32.xlu0 %v121
    %v123 = vpop.xlane.xlu0 %122
    %v124 = vrcp.pop %v123
    %v125 = vmul.f32 %v123, %v124
    %v126 = vsub.f32 1.0, %v125
    %v127 = vmul.f32 %v124, %v126
    %v128 = vadd.f32 %v124, %v127
    %vm129 = vweird.f32 %v123
    %vm130 = vweird.f32 %v124
    %vm131 = vmor %vm129, %vm130
    %v132 = vsel %vm131, %v124, %v128
    %v133 = vand.u32 2147483647, %v123
    %vm134 = vcmp.eq.f32.partialorder %v133, 8.507059e+37
    %v135 = vand.u32 %v123, 2147483648
    %v136 = vor.u32 1.1754944e-38, %v135
    %v137 = vsel %vm134, %v136, %v132
    %v140 = vmul.f32 %v113, %v21
    %v141 = vmul.f32 %v116, %v22
    %v142 = vsel %vm31, %v140, 0.0
    %v143 = vrot.slane %v142, 4
    %v144 = vadd.f32 %v142, %v143
    %v145 = vrot.slane %v144, 2
    %v146 = vadd.f32 %v144, %v145
    %v147 = vrot.slane %v146, 1
    %v148 = vadd.f32 %v146, %v147
    %v149 = vsel %vm31, %v141, 0.0
    %v150 = vrot.slane %v149, 4
    %v151 = vadd.f32 %v149, %v150
    %v152 = vrot.slane %v151, 2
    %v153 = vadd.f32 %v151, %v152
    %v154 = vrot.slane %v153, 1
    %v155 = vadd.f32 %v153, %v154
    %v157 = vrot.slane %v137, 1
    %v160 = vmul.f32 %v148, %v137
    %v161 = vmul.f32 %v155, %v157
    %v164 = vrot.slane %v161, 7
    %v165 = vsel %vm91, %v164, %v160
    %vm167 = vcmask 517120
    %168 = vst.msk [vmem:[#allocation2] sm:$0x3] %vm167, %v165
    %v169 = vperm.slane %v137, 0
    %v170 = vperm.slane %v137, 1
    %v173 = vmul.f32 %v106, %v169
    %v174 = vmul.f32 %v108, %v170
    %177 = vset.pattern.permute.xlu0 0
    %178 = vperm.xlu0 %177, %v173
    %v179 = vpop.permute.xlu0 %178
    %180 = vset.pattern.permute.xlu0 0
    %181 = vperm.xlu0 %180, %v174
    %v182 = vpop.permute.xlu0 %181
    %v183 = vperm.slane %v179, %v88
    %v184 = vperm.slane %v182, %v88
    %v185 = vsel %vm91, %v184, %v183
    %187 = vst.msk [vmem:[#allocation4] sm:$0x3] %vm94, %v185
    // Predicated region
    $region18: #{tpu_custom_call.1} parent=1 // pred_check
      _
    $region19: #{tpu_custom_call.1} parent=1 // pred_check_branch
      %189 = sbr.rel (0) target = $region21
    $region20: #{tpu_custom_call.1} parent=1 // pred_region
      %191 = vsyncadd [#allocation3], 0
      %s193 = sshll.u32 [#allocation2], 4
      %s194 = int_to_ptr.vmem [resolvable:$true] %s193
      %s195 = sshll.u32 %s4, 4
      %s196 = int_to_ptr.hbm [resolvable:$true] %s195
      %198 = dma.vmem_to_hbm [thread:$0]  %s194, 32, %s196, [#allocation3]
    $region21: #{tpu_custom_call.1} parent=1 // pred_fallthru
      _
    // Predicated region
    $region22: #{tpu_custom_call.1} parent=1 // pred_check
      _
    $region23: #{tpu_custom_call.1} parent=1 // pred_check_branch
      %200 = sbr.rel (0) target = $region25
    $region24: #{tpu_custom_call.1} parent=1 // pred_region
      %202 = vsyncadd [#allocation5], 0
      %s204 = sshll.u32 [#allocation4], 4
      %s205 = int_to_ptr.vmem [resolvable:$true] %s204
      %s206 = sshll.u32 %s5, 4
      %s207 = int_to_ptr.hbm [resolvable:$true] %s206
      %209 = dma.vmem_to_hbm [thread:$0]  %s205, 32, %s207, [#allocation5]
    $region25: #{tpu_custom_call.1} parent=1 // pred_fallthru
      _
    // Predicated region
    $region26: #{tpu_custom_call.1} parent=1 // pred_check
      _
    $region27: #{tpu_custom_call.1} parent=1 // pred_check_branch
      %211 = sbr.rel (0) target = $region29
    $region28: #{tpu_custom_call.1} parent=1 // pred_region
      %213 = dma.done [#allocation3], 32
    $region29: #{tpu_custom_call.1} parent=1 // pred_fallthru
      _
    // Predicated region
    $region30: #{tpu_custom_call.1} parent=1 // pred_check
      _
    $region31: #{tpu_custom_call.1} parent=1 // pred_check_branch
      %215 = sbr.rel (0) target = $region33
    $region32: #{tpu_custom_call.1} parent=1 // pred_region
      %217 = dma.done [#allocation5], 32
    $region33: #{tpu_custom_call.1} parent=1 // pred_fallthru
      _
    %218 = vsyncpa [#allocation3], 1
    %219 = vsyncpa [#allocation5], 1

</llo_original>
